<compile_context>
chip_gen: v7x
topology: tpu7x:2x2x1
jax: 0.10.0
libtpu: 0.0.40
codegen_flags: <defaults>
</compile_context>

<pallas_src>
import jax
import jax.numpy as jnp
from jax.experimental import pallas as pl
from jax.experimental.pallas import tpu as pltpu


def _round_up(x, m):
    return ((x + m - 1) // m) * m


def _gtconv_kernel(filt_ref, a_ref, out_ref):
    # filt_ref : SMEM, (C_out, C_in) f32    -- scalar filter table
    # a_ref    : VMEM, (C_in, TM, TN)       -- one spatial tile of every relation
    # out_ref  : VMEM, (C_out, TM, TN)      -- same spatial tile of every output
    c_out, c_in = filt_ref.shape

    # Hoist all scalar reads out of the accumulation loops.
    w = [[filt_ref[o, j] for j in range(c_in)] for o in range(c_out)]

    # j-outer loop nest: at most C_out accumulators + one input tile live at a
    # time (bounded VMEM/vreg pressure when tiles are large or inputs are bf16).
    accs = [None] * c_out
    for j in range(c_in):           # static unroll, C_in is small
        aj = a_ref[j].astype(jnp.float32)
        for o in range(c_out):      # static unroll, C_out is small
            term = aj * w[o][j]
            accs[o] = term if j == 0 else accs[o] + term

    for o in range(c_out):
        out_ref[o, :, :] = accs[o].astype(out_ref.dtype)


def gtconv_forward(A, weight, softmax_flag=True, tm=256, tn=2048,
                   pipeline_budget_bytes=24 * 1024 * 1024,
                   vmem_limit_bytes=48 * 1024 * 1024):
    """A: (C_in, N, N) dense stacked adjacency; weight: (C_out, C_in)."""
    c_out, c_in = weight.shape
    c_in_a, n, n2 = A.shape
    assert c_in_a == c_in and n == n2

    # Filter construction is tiny glue -> plain JAX.
    filt = jax.nn.softmax(weight, axis=1) if softmax_flag else weight
    filt = filt.astype(jnp.float32)

    itemsize = jnp.dtype(A.dtype).itemsize
    sub = 16 if itemsize < 4 else 8   # sublane multiple (bf16 packs 2 rows)

    # Clamp tiles to the problem size, keeping them sublane/lane dense.
    tm = min(tm, _round_up(n, sub))
    tn = min(tn, _round_up(n, 128))

    # Shrink tiles (prefer tn) until the double-buffered pipeline footprint
    # fits a v7x-safe budget (~24 MiB at C_in=4, C_out=2, f32 defaults).
    def footprint(tm_, tn_):
        return 2 * (c_in + c_out) * tm_ * tn_ * itemsize

    while footprint(tm, tn) > pipeline_budget_bytes and (tm > sub or tn > 128):
        if tn >= tm and tn > 128:
            tn = max(128, tn // 2)
        else:
            tm = max(sub, tm // 2)

    # Keep >=2 row tiles when possible so v7x megacore has work for both TCs.
    if pl.cdiv(n, tm) < 2 and n > sub:
        tm = _round_up(pl.cdiv(n, 2), sub)

    grid = (pl.cdiv(n, tm), pl.cdiv(n, tn))

    cost = pl.CostEstimate(
        flops=2 * c_out * c_in * n * n,
        transcendentals=0,
        bytes_accessed=(c_in + c_out) * n * n * itemsize,
    )

    out = pl.pallas_call(
        _gtconv_kernel,
        out_shape=jax.ShapeDtypeStruct((c_out, n, n), A.dtype),
        grid_spec=pltpu.PrefetchScalarGridSpec(
            num_scalar_prefetch=0,
            grid=grid,
            in_specs=[
                # Small filter table lives in SMEM (scalar-indexed).
                pl.BlockSpec(memory_space=pltpu.MemorySpace.SMEM),
                # One (C_in, TM, TN) spatial tile of the adjacency stack.
                pl.BlockSpec((c_in, tm, tn), lambda r, c: (0, r, c)),
            ],
            out_specs=pl.BlockSpec((c_out, tm, tn), lambda r, c: (0, r, c)),
        ),
        compiler_params=pltpu.CompilerParams(
            # Row/col tiles are independent -> megacore shards disjoint tiles
            # on v7x; no effect on single-TC v5e/v6e.
            dimension_semantics=("parallel", "parallel"),
            # Explicit limit: above v5e's 16 MiB / v6e's 32 MiB scoped
            # defaults, with headroom under v7x's 64 MiB physical VMEM.
            vmem_limit_bytes=vmem_limit_bytes,
        ),
        cost_estimate=cost,
    )(filt, A)

    return out


if __name__ == "__main__":
    in_channels = 4    # number of relation sub-graphs |R|
    out_channels = 2   # number of hybrid adjacency matrices to produce
    num_nodes = 16

    key = jax.random.PRNGKey(0)
    k_w, k_a = jax.random.split(key)

    # Deterministic parameter init matching nn.init.normal_(std=0.01).
    weight = 0.01 * jax.random.normal(
        k_w, (out_channels, in_channels), dtype=jnp.float32
    )

    # Dense stacked adjacency matrices with non-negative edge weights.
    A = jax.random.uniform(
        k_a, (in_channels, num_nodes, num_nodes), dtype=jnp.float32
    )

    out = gtconv_forward(A, weight, softmax_flag=True)
    out = jax.block_until_ready(out)

    # Pure-JAX reference check.
    filt = jax.nn.softmax(weight, axis=1)
    ref = jnp.einsum("oi,inm->onm", filt, A)
    assert out.shape == (out_channels, num_nodes, num_nodes)
    assert jnp.allclose(out, ref, atol=1e-5, rtol=1e-5)

    print("KERNEL_OK")
</pallas_src>

<mosaic_0001>
module attributes {stable_mosaic.version = 11 : i64} {
  func.func @_gtconv_kernel(%arg0: i32, %arg1: i32, %arg2: memref<2x4xf32, #tpu.memory_space<smem>>, %arg3: memref<4x8x128xf32, #tpu.memory_space<vmem>>, %arg4: memref<2x8x128xf32, #tpu.memory_space<vmem>>) attributes {dimension_semantics = [#tpu.dimension_semantics<parallel>, #tpu.dimension_semantics<parallel>], iteration_bounds = array<i64: 2, 1>, scalar_prefetch = 0 : i64, scratch_operands = 0 : i64, tpu.core_type = #tpu.core_type<tc>, window_params = [{transform_indices = @transform_0, window_bounds = array<i64: 2, 4>}, {transform_indices = @transform_1, window_bounds = array<i64: 4, 8, 128>}, {transform_indices = @transform_2, window_bounds = array<i64: 2, 8, 128>}]} {
    %c0 = arith.constant 0 : index
    %c0_0 = arith.constant 0 : index
    %0 = memref.load %arg2[%c0, %c0_0] : memref<2x4xf32, #tpu.memory_space<smem>>
    %c0_1 = arith.constant 0 : index
    %c1 = arith.constant 1 : index
    %1 = memref.load %arg2[%c0_1, %c1] : memref<2x4xf32, #tpu.memory_space<smem>>
    %c0_2 = arith.constant 0 : index
    %c2 = arith.constant 2 : index
    %2 = memref.load %arg2[%c0_2, %c2] : memref<2x4xf32, #tpu.memory_space<smem>>
    %c0_3 = arith.constant 0 : index
    %c3 = arith.constant 3 : index
    %3 = memref.load %arg2[%c0_3, %c3] : memref<2x4xf32, #tpu.memory_space<smem>>
    %c1_4 = arith.constant 1 : index
    %c0_5 = arith.constant 0 : index
    %4 = memref.load %arg2[%c1_4, %c0_5] : memref<2x4xf32, #tpu.memory_space<smem>>
    %c1_6 = arith.constant 1 : index
    %c1_7 = arith.constant 1 : index
    %5 = memref.load %arg2[%c1_6, %c1_7] : memref<2x4xf32, #tpu.memory_space<smem>>
    %c1_8 = arith.constant 1 : index
    %c2_9 = arith.constant 2 : index
    %6 = memref.load %arg2[%c1_8, %c2_9] : memref<2x4xf32, #tpu.memory_space<smem>>
    %c1_10 = arith.constant 1 : index
    %c3_11 = arith.constant 3 : index
    %7 = memref.load %arg2[%c1_10, %c3_11] : memref<2x4xf32, #tpu.memory_space<smem>>
    %c0_12 = arith.constant 0 : index
    %c0_13 = arith.constant 0 : index
    %c0_14 = arith.constant 0 : index
    %8 = vector.load %arg3[%c0_12, %c0_13, %c0_14] : memref<4x8x128xf32, #tpu.memory_space<vmem>>, vector<1x8x128xf32>
    %9 = vector.shape_cast %8 : vector<1x8x128xf32> to vector<8x128xf32>
    %10 = vector.broadcast %0 : f32 to vector<8x128xf32>
    %11 = arith.mulf %9, %10 : vector<8x128xf32>
    %12 = vector.broadcast %4 : f32 to vector<8x128xf32>
    %13 = arith.mulf %9, %12 : vector<8x128xf32>
    %c1_15 = arith.constant 1 : index
    %c0_16 = arith.constant 0 : index
    %c0_17 = arith.constant 0 : index
    %14 = vector.load %arg3[%c1_15, %c0_16, %c0_17] : memref<4x8x128xf32, #tpu.memory_space<vmem>>, vector<1x8x128xf32>
    %15 = vector.shape_cast %14 : vector<1x8x128xf32> to vector<8x128xf32>
    %16 = vector.broadcast %1 : f32 to vector<8x128xf32>
    %17 = arith.mulf %15, %16 : vector<8x128xf32>
    %18 = arith.addf %11, %17 : vector<8x128xf32>
    %19 = vector.broadcast %5 : f32 to vector<8x128xf32>
    %20 = arith.mulf %15, %19 : vector<8x128xf32>
    %21 = arith.addf %13, %20 : vector<8x128xf32>
    %c2_18 = arith.constant 2 : index
    %c0_19 = arith.constant 0 : index
    %c0_20 = arith.constant 0 : index
    %22 = vector.load %arg3[%c2_18, %c0_19, %c0_20] : memref<4x8x128xf32, #tpu.memory_space<vmem>>, vector<1x8x128xf32>
    %23 = vector.shape_cast %22 : vector<1x8x128xf32> to vector<8x128xf32>
    %24 = vector.broadcast %2 : f32 to vector<8x128xf32>
    %25 = arith.mulf %23, %24 : vector<8x128xf32>
    %26 = arith.addf %18, %25 : vector<8x128xf32>
    %27 = vector.broadcast %6 : f32 to vector<8x128xf32>
    %28 = arith.mulf %23, %27 : vector<8x128xf32>
    %29 = arith.addf %21, %28 : vector<8x128xf32>
    %c3_21 = arith.constant 3 : index
    %c0_22 = arith.constant 0 : index
    %c0_23 = arith.constant 0 : index
    %30 = vector.load %arg3[%c3_21, %c0_22, %c0_23] : memref<4x8x128xf32, #tpu.memory_space<vmem>>, vector<1x8x128xf32>
    %31 = vector.shape_cast %30 : vector<1x8x128xf32> to vector<8x128xf32>
    %32 = vector.broadcast %3 : f32 to vector<8x128xf32>
    %33 = arith.mulf %31, %32 : vector<8x128xf32>
    %34 = arith.addf %26, %33 : vector<8x128xf32>
    %35 = vector.broadcast %7 : f32 to vector<8x128xf32>
    %36 = arith.mulf %31, %35 : vector<8x128xf32>
    %37 = arith.addf %29, %36 : vector<8x128xf32>
    %c0_24 = arith.constant 0 : index
    %c0_25 = arith.constant 0 : index
    %c0_26 = arith.constant 0 : index
    %38 = vector.load %arg4[%c0_24, %c0_25, %c0_26] : memref<2x8x128xf32, #tpu.memory_space<vmem>>, vector<1x8x128xf32>
    %39 = vector.shape_cast %38 : vector<1x8x128xf32> to vector<8x128xf32>
    %40 = vector.shape_cast %34 : vector<8x128xf32> to vector<1x8x128xf32>
    tpu.vector_store %arg4[%c0_24, %c0_25, %c0_26], %40 {strides = array<i32>} : memref<2x8x128xf32, #tpu.memory_space<vmem>>, vector<1x8x128xf32>,
    %c1_27 = arith.constant 1 : index
    %c0_28 = arith.constant 0 : index
    %c0_29 = arith.constant 0 : index
    %41 = vector.load %arg4[%c1_27, %c0_28, %c0_29] : memref<2x8x128xf32, #tpu.memory_space<vmem>>, vector<1x8x128xf32>
    %42 = vector.shape_cast %41 : vector<1x8x128xf32> to vector<8x128xf32>
    %43 = vector.shape_cast %37 : vector<8x128xf32> to vector<1x8x128xf32>
    tpu.vector_store %arg4[%c1_27, %c0_28, %c0_29], %43 {strides = array<i32>} : memref<2x8x128xf32, #tpu.memory_space<vmem>>, vector<1x8x128xf32>,
    return
  }
  func.func @transform_0(%arg0: i32, %arg1: i32) -> (i32, i32) {
    %c0_i32 = arith.constant 0 : i32
    %c0_i32_0 = arith.constant 0 : i32
    %c0_i32_1 = arith.constant 0 : i32
    return %c0_i32, %c0_i32_0 : i32, i32
  }
  func.func @transform_1(%arg0: i32, %arg1: i32) -> (i32, i32, i32) {
    %c0_i32 = arith.constant 0 : i32
    %c0_i32_0 = arith.constant 0 : i32
    return %c0_i32, %arg0, %arg1 : i32, i32, i32
  }
  func.func @transform_2(%arg0: i32, %arg1: i32) -> (i32, i32, i32) {
    %c0_i32 = arith.constant 0 : i32
    %c0_i32_0 = arith.constant 0 : i32
    return %c0_i32, %arg0, %arg1 : i32, i32, i32
  }
}

</mosaic_0001>

<llo_original>
// kernel: tpu_custom_call.1
$region0: #{tpu_custom_call.1}
  #allocation0 [shape = 'u32[]', space=smem, size = 0x4, offset = 0x4, fixed_abs, tag = 'smem constant byte address 0x4 - core index']
  #allocation1 [shape = 'u32[144,128]{1,0:T(1,128)}', space=vmem, size = 0x12000, scoped, tag = 'internal scratch']
  %s0 = inlined_call_operand.hbm [shape: f32[2,4], index: 0, kind: input, shape index: {}]
  %s1 = inlined_call_operand.hbm [shape: f32[4,16,16], index: 1, kind: input, shape index: {}]
  %s2 = inlined_call_operand.hbm [shape: f32[2,16,16], index: 2, kind: output, shape index: {}]
  %s3 = sld [smem:[#allocation0]]
  $region49: #{tpu_custom_call.1} parent=0
    _
  %s5 = ssub.s32 1, %s3
  %s6 = scalar_select 0, %s5, %s3
  $region1: #{tpu_custom_call.1} parent=0
    #allocation2 [shape = 'u8[1024]{0}', space=smem, size = 0x400, scoped, tag = 'input window, operand 0, single buffered']
    #allocation3 [shape = 's32[2]{0}', space=sflag, size = 0x8, scoped, tag = 'scoped memory for tpu_custom_call.1']
    #allocation4 [shape = 's32[2]{0}', space=sflag, size = 0x8, scoped, tag = 'scoped memory for tpu_custom_call.1']
    #allocation5 [shape = 's32[2]{0}', space=sflag, size = 0x8, scoped, tag = 'scoped memory for tpu_custom_call.1']
    #allocation6 [shape = 'u8[32768]{0}', space=vmem, size = 0x8000, scoped, tag = 'input window, operand 1']
    #allocation7 [shape = 'u8[16384]{0}', space=vmem, size = 0x4000, scoped, tag = 'output window, operand 0']
    %7 = vsyncpa [#allocation5], 0
    %8 = vsyncpa [#allocation3], 0
    %s9 = scalar_lea.sflag [#allocation3], 1
    %10 = vsyncpa %s9, 0
    %11 = vsyncpa [#allocation4], 0
    %s12 = scalar_lea.sflag [#allocation4], 1
    %13 = vsyncpa %s12, 0
    loop: start=0, step=1, limit=4
    $region2: #{tpu_custom_call.1} parent=1 // loop_pre_header
      _
    $region3: #{tpu_custom_call.1} parent=1 // loop_header
      %s15 = sphi 0, %s19
      %p16 = scmp.ge.s32.totalorder %s15, 4
      %s22 = sphi 0, %s34
      %s23 = sphi 0, %s30
      %s24 = sphi 0, %s22
      %s25 = sphi 0, %s23
      %s26 = sphi 0, %s24
      %s27 = sphi 0, %s25
      %s35 = sphi 0, %s35
      %s37 = sphi 0, %s35
      %s38 = sphi 0, %s37
      %s52 = sphi 0, %s38
      %s60 = sphi 0, %s62
      %s63 = sphi 0, %s60
      %s64 = sphi 0, %s63
      %s80 = sphi 0, %s64
      %s88 = sphi 0, %s90
      %s91 = sphi 0, %s88
      %s92 = sphi 0, %s91
      %s108 = sphi 0, %s92
    $region4: #{tpu_custom_call.1} parent=1 // loop_header_branch
      %18 = sbr.rel (%p16) target = $region8
    $region5: #{tpu_custom_call.1} parent=1 // loop_body
      %s20 = ssub.s32 %s15, 1
      %s21 = ssub.s32 %s15, 2
      %s28 = sadd.s32 1, %s23
      %p29 = scmp.ge.s32.totalorder %s28, 1
      %s30 = scalar_select %p29, 0, %s28
      %s31 = sadd.s32 1, %s22
      %s32 = scalar_select %p29, %s31, %s22
      %p33 = scmp.ge.s32.totalorder %s32, 2
      %s34 = scalar_select %p33, 0, %s32
      %s36 = sadd.s32 %s35, 1
      %p39 = scmp.eq.s32.totalorder %s15, 1
      %p40 = scmp.ne.s32.totalorder %s35, %s37
      %p41 = scmp.eq.s32.totalorder %s15, 0
      %p42 = por %p40, %p41
      %p43 = scmp.ne.s32.totalorder %s35, %s37
      %p44 = scmp.eq.s32.totalorder %s20, 1
      %p45 = por %p43, %p44
      %p46 = scmp.ne.s32.totalorder %s37, %s38
      %p47 = scmp.eq.s32.totalorder %s20, 0
      %p48 = por %p46, %p47
      %p49 = scmp.ne.s32.totalorder %s37, %s38
      %p50 = scmp.eq.s32.totalorder %s21, 1
      %p51 = por %p49, %p50
      %p53 = scmp.ne.s32.totalorder %s38, %s52
      %p54 = scmp.eq.s32.totalorder %s21, 0
      %p55 = por %p53, %p54
      %s56 = ssub.s32 %s22, %s34
      %s57 = ssub.s32 %s23, %s30
      %s58 = sor.u32 %s56, %s57
      %p59 = scmp.eq.s32.totalorder %s58, 0
      %s61 = sadd.s32 %s60, 1
      %s62 = scalar_select %p59, %s60, %s61
      %p65 = pneg %p59
      %p66 = scmp.eq.s32.totalorder %s15, 1
      %p67 = por %p65, %p66
      %p68 = scmp.ne.s32.totalorder %s60, %s63
      %p69 = scmp.eq.s32.totalorder %s15, 0
      %p70 = por %p68, %p69
      %p71 = scmp.ne.s32.totalorder %s60, %s63
      %p72 = scmp.eq.s32.totalorder %s20, 1
      %p73 = por %p71, %p72
      %p74 = scmp.ne.s32.totalorder %s63, %s64
      %p75 = scmp.eq.s32.totalorder %s20, 0
      %p76 = por %p74, %p75
      %p77 = scmp.ne.s32.totalorder %s63, %s64
      %p78 = scmp.eq.s32.totalorder %s21, 1
      %p79 = por %p77, %p78
      %p81 = scmp.ne.s32.totalorder %s64, %s80
      %p82 = scmp.eq.s32.totalorder %s21, 0
      %p83 = por %p81, %p82
      %s84 = ssub.s32 %s22, %s34
      %s85 = ssub.s32 %s23, %s30
      %s86 = sor.u32 %s84, %s85
      %p87 = scmp.eq.s32.totalorder %s86, 0
      %s89 = sadd.s32 %s88, 1
      %s90 = scalar_select %p87, %s88, %s89
      %p93 = pneg %p87
      %p94 = scmp.eq.s32.totalorder %s15, 1
      %p95 = por %p93, %p94
      %p96 = scmp.ne.s32.totalorder %s88, %s91
      %p97 = scmp.eq.s32.totalorder %s15, 0
      %p98 = por %p96, %p97
      %p99 = scmp.ne.s32.totalorder %s88, %s91
      %p100 = scmp.eq.s32.totalorder %s20, 1
      %p101 = por %p99, %p100
      %p102 = scmp.ne.s32.totalorder %s91, %s92
      %p103 = scmp.eq.s32.totalorder %s20, 0
      %p104 = por %p102, %p103
      %p105 = scmp.ne.s32.totalorder %s91, %s92
      %p106 = scmp.eq.s32.totalorder %s21, 1
      %p107 = por %p105, %p106
      %p109 = scmp.ne.s32.totalorder %s92, %s108
      %p110 = scmp.eq.s32.totalorder %s21, 0
      %p111 = por %p109, %p110
      %p112 = scmp.le.s32.totalorder 1, %s15
      %p113 = scmp.lt.s32.totalorder %s15, 3
      %p114 = pnand %p112, %p113
      %p115 = pneg %p114
      // Predicated region
      $region9: #{tpu_custom_call.1} parent=5 // pred_check
        _
      $region10: #{tpu_custom_call.1} parent=5 // pred_check_branch
        %117 = sbr.rel (%p114) target = $region12
      $region11: #{tpu_custom_call.1} parent=5 // pred_region
        %s118 = ssub.s32 %s15, 1
        // Predicated region
        $region13: #{tpu_custom_call.1} parent=11 // pred_check
          %p119 = pneg %p48
        $region14: #{tpu_custom_call.1} parent=11 // pred_check_branch
          %121 = sbr.rel (%p119) target = $region16
        $region15: #{tpu_custom_call.1} parent=11 // pred_region
          %s123 = ssub.s32 32, 32
          %124 = vsyncadd [#allocation5], %s123
          %127 = dma.hbm_to_smem %s0, 32, [#allocation2], [#allocation5]
        $region16: #{tpu_custom_call.1} parent=11 // pred_fallthru
          _
      $region12: #{tpu_custom_call.1} parent=5 // pred_fallthru
        _
      %p128 = scmp.lt.s32.totalorder %s15, 2
      // Predicated region
      $region17: #{tpu_custom_call.1} parent=5 // pred_check
        %p129 = pneg %p128
      $region18: #{tpu_custom_call.1} parent=5 // pred_check_branch
        %131 = sbr.rel (%p129) target = $region20
      $region19: #{tpu_custom_call.1} parent=5 // pred_region
        // Predicated region
        $region21: #{tpu_custom_call.1} parent=19 // pred_check
          %p132 = pneg %p70
        $region22: #{tpu_custom_call.1} parent=19 // pred_check_branch
          %134 = sbr.rel (%p132) target = $region24
        $region23: #{tpu_custom_call.1} parent=19 // pred_region
          %s135 = sand.u32 %s60, 1
          %s136 = scalar_lea.sflag [#allocation3], %s135
          %s137 = sand.u32 %s60, 1
          %s138 = smul.addr %s137, 32
          %s139 = scalar_lea.vmem [#allocation6], %s138
          %s141 = ssub.s32 512, 512
          %142 = vsyncadd %s136, %s141
          %s143 = sadd.s32 %s23, %s22
          %s144 = smul.addr %s143, 128
          %s145 = scalar_lea.hbm %s1, %s144
          %s146 = sshll.u32 %s139, 4
          %s147 = int_to_ptr.vmem [resolvable:$true] %s146
          %152 = dma.hbm_to_vmem [thread:$0]  %s145, 512, %s147, %s136, 256, 128, 8
        $region24: #{tpu_custom_call.1} parent=19 // pred_fallthru
          _
      $region20: #{tpu_custom_call.1} parent=5 // pred_fallthru
        _
      %p153 = scmp.le.s32.totalorder 1, %s15
      %p154 = scmp.lt.s32.totalorder %s15, 3
      %p155 = pnand %p153, %p154
      %p156 = pneg %p155
      // Predicated region
      $region25: #{tpu_custom_call.1} parent=5 // pred_check
        _
      $region26: #{tpu_custom_call.1} parent=5 // pred_check_branch
        %158 = sbr.rel (%p155) target = $region28
      $region27: #{tpu_custom_call.1} parent=5 // pred_region
        %s159 = ssub.s32 %s15, 1
        // Predicated region
        $region29: #{tpu_custom_call.1} parent=27 // pred_check
          %p160 = pneg %p48
        $region30: #{tpu_custom_call.1} parent=27 // pred_check_branch
          %162 = sbr.rel (%p160) target = $region32
        $region31: #{tpu_custom_call.1} parent=27 // pred_region
          %163 = dma.done [#allocation5], 32
        $region32: #{tpu_custom_call.1} parent=27 // pred_fallthru
          _
        %s164 = sand.u32 %s63, 1
        %s165 = scalar_lea.sflag [#allocation3], %s164
        %s166 = sand.u32 %s63, 1
        %s167 = smul.addr %s166, 32
        %s168 = scalar_lea.vmem [#allocation6], %s167
        // Predicated region
        $region33: #{tpu_custom_call.1} parent=27 // pred_check
          %p169 = pneg %p76
        $region34: #{tpu_custom_call.1} parent=27 // pred_check_branch
          %171 = sbr.rel (%p169) target = $region36
        $region35: #{tpu_custom_call.1} parent=27 // pred_region
          %172 = dma.done %s165, 512
        $region36: #{tpu_custom_call.1} parent=27 // pred_fallthru
          _
        %173 = sfence
        %p174 = pneg %p48
        %p175 = pneg %p45
        %s176 = sand.u32 %s63, 1
        %s177 = scalar_lea.sflag [#allocation3], %s176
        %s178 = sand.u32 %s63, 1
        %s179 = smul.addr %s178, 32
        %s180 = scalar_lea.vmem [#allocation6], %s179
        %p181 = pneg %p76
        %p182 = pneg %p73
        %p183 = pneg %p104
        %p184 = pneg %p101
        %s185 = sand.u32 %s91, 1
        %s186 = scalar_lea.sflag [#allocation4], %s185
        %s187 = sand.u32 %s91, 1
        %s188 = smul.addr %s187, 16
        %s189 = scalar_lea.vmem [#allocation7], %s188
        %s190 = sld [smem:[#allocation2]]
        %s191 = sld [smem:[#allocation2 + $0x1]]
        %s192 = sld [smem:[#allocation2 + $0x2]]
        %s193 = sld [smem:[#allocation2 + $0x3]]
        %s194 = sld [smem:[#allocation2 + $0x80]]
        %s195 = sld [smem:[#allocation2 + $0x81]]
        %s196 = sld [smem:[#allocation2 + $0x82]]
        %s197 = sld [smem:[#allocation2 + $0x83]]
        %v198 = vld [vmem:[%s168] sm:$0xff]
        %v199 = vstv %s190
        %v200 = vmul.f32 %v198, %v199
        %v201 = vstv %s194
        %v202 = vmul.f32 %v198, %v201
        %s203 = scalar_lea.vmem %s168, 8 [#allocation6]
        %v204 = vld [vmem:[%s203] sm:$0xff]
        %v205 = vstv %s191
        %v206 = vmul.f32 %v204, %v205
        %v207 = vadd.f32 %v200, %v206
        %v208 = vstv %s195
        %v209 = vmul.f32 %v204, %v208
        %v210 = vadd.f32 %v202, %v209
        %s211 = scalar_lea.vmem %s168, 16 [#allocation6]
        %v212 = vld [vmem:[%s211] sm:$0xff]
        %v213 = vstv %s192
        %v214 = vmul.f32 %v212, %v213
        %v215 = vadd.f32 %v207, %v214
        %v216 = vstv %s196
        %v217 = vmul.f32 %v212, %v216
        %v218 = vadd.f32 %v210, %v217
        %s219 = scalar_lea.vmem %s168, 24 [#allocation6]
        %v220 = vld [vmem:[%s219] sm:$0xff]
        %v221 = vstv %s193
        %v222 = vmul.f32 %v220, %v221
        %v223 = vadd.f32 %v215, %v222
        %v224 = vstv %s197
        %v225 = vmul.f32 %v220, %v224
        %v226 = vadd.f32 %v218, %v225
        %227 = vst [vmem:[%s189] sm:$0xff] %v223
        %s228 = scalar_lea.vmem %s189, 8 [#allocation7]
        %229 = vst [vmem:[%s228] sm:$0xff] %v226
        %s230 = sand.u32 %s91, 1
        %s231 = scalar_lea.sflag [#allocation4], %s230
        %s232 = sand.u32 %s91, 1
        %s233 = smul.addr %s232, 16
        %s234 = scalar_lea.vmem [#allocation7], %s233
        // Predicated region
        $region37: #{tpu_custom_call.1} parent=27 // pred_check
          %p235 = pneg %p101
        $region38: #{tpu_custom_call.1} parent=27 // pred_check_branch
          %237 = sbr.rel (%p235) target = $region40
        $region39: #{tpu_custom_call.1} parent=27 // pred_region
          %s239 = ssub.s32 256, 256
          %240 = vsyncadd %s231, %s239
          %s241 = sadd.s32 %s25, %s24
          %s242 = smul.addr %s241, 128
          %s243 = scalar_lea.hbm %s2, %s242
          %s244 = sshll.u32 %s234, 4
          %s245 = int_to_ptr.vmem [resolvable:$true] %s244
          %250 = dma.vmem_to_hbm [thread:$0]  %s245, 256, %s243, %s231, 128, 256, 8
        $region40: #{tpu_custom_call.1} parent=27 // pred_fallthru
          _
      $region28: #{tpu_custom_call.1} parent=5 // pred_fallthru
        _
      %p251 = scmp.le.s32.totalorder 2, %s15
      // Predicated region
      $region41: #{tpu_custom_call.1} parent=5 // pred_check
        %p252 = pneg %p251
      $region42: #{tpu_custom_call.1} parent=5 // pred_check_branch
        %254 = sbr.rel (%p252) target = $region44
      $region43: #{tpu_custom_call.1} parent=5 // pred_region
        %s255 = ssub.s32 %s15, 2
        // Predicated region
        $region45: #{tpu_custom_call.1} parent=43 // pred_check
          %p256 = pneg %p107
        $region46: #{tpu_custom_call.1} parent=43 // pred_check_branch
          %258 = sbr.rel (%p256) target = $region48
        $region47: #{tpu_custom_call.1} parent=43 // pred_region
          %s259 = sand.u32 %s92, 1
          %s260 = scalar_lea.sflag [#allocation4], %s259
          %s261 = sand.u32 %s92, 1
          %s262 = smul.addr %s261, 16
          %s263 = scalar_lea.vmem [#allocation7], %s262
          %264 = dma.done %s260, 256
        $region48: #{tpu_custom_call.1} parent=43 // pred_fallthru
          _
      $region44: #{tpu_custom_call.1} parent=5 // pred_fallthru
        _
    $region6: #{tpu_custom_call.1} parent=1 // loop_footer
      %s19 = sadd.s32 1, %s15
    $region7: #{tpu_custom_call.1} parent=1 // loop_footer_branch
      %14 = sbr.rel target = $region3
    $region8: #{tpu_custom_call.1} parent=1 // loop_exit
      _
    %265 = vsyncpa [#allocation3], 1
    %s266 = scalar_lea.sflag [#allocation3], 1
    %267 = vsyncpa %s266, 1
    %268 = vsyncpa [#allocation4], 1
    %s269 = scalar_lea.sflag [#allocation4], 1
    %270 = vsyncpa %s269, 1
    %271 = vsyncpa [#allocation5], 1
    %s272 = scalar_lea.sflag [#allocation5], 1
    %273 = vsyncpa %s272, 1

</llo_original>
